<compile_context>
chip_gen: v5e
topology: v5e:2x2
jax: 0.10.0
libtpu: 0.0.40
codegen_flags: <defaults>
</compile_context>

<pallas_src>
import jax
import jax.numpy as jnp
from jax.experimental import pallas as pl
from jax.experimental.pallas import tpu as pltpu


# ---------------------------------------------------------------------------
# Kernel: elementwise mask-blend + Lame parameters on one (tile_h, W_pad) tile.
# ---------------------------------------------------------------------------
def _fwi_param_kernel(vp_blk, vs_blk, den_blk,
                      vpref_blk, vsref_blk, denref_blk, mask_blk,
                      lam_out, mu_out, den_out):
    m = mask_blk[...].astype(jnp.float32)

    vpr = vpref_blk[...]
    vsr = vsref_blk[...]
    dnr = denref_blk[...]

    # blend as ref + m*(x - ref): one FMA per field (== m*x + (1-m)*ref).
    vp = vpr + m * (vp_blk[...] - vpr)
    vs = vsr + m * (vs_blk[...] - vsr)
    dn = dnr + m * (den_blk[...] - dnr)

    vp2 = vp * vp
    vs2 = vs * vs

    # Multiply by 1e-6 instead of /1e6 (≈1-ulp drift vs the torch module;
    # compute is free here — HBM bound — but the mul keeps the VPU path short).
    scale = jnp.float32(1e-6)
    lam_out[...] = (vp2 - 2.0 * vs2) * dn * scale
    mu_out[...] = vs2 * dn * scale
    den_out[...] = dn


# ---------------------------------------------------------------------------
# Helpers
# ---------------------------------------------------------------------------
def _round_up(a, b):
    return ((a + b - 1) // b) * b


def _replicate_pad(x, nPml, nPad, extra_w=0):
    """F.pad(..., (nPml, nPml, nPml, nPml + nPad), mode='replicate'),
    optionally extending the right edge by extra_w lane-padding columns."""
    return jnp.pad(x.astype(jnp.float32),
                   ((nPml, nPml + nPad), (nPml, nPml + extra_w)),
                   mode="edge")


def _choose_tile_h(H, W_pad, *, block_budget_bytes=24 * 1024 * 1024,
                   min_grid=2):
    """Rows per block: multiple of 8, sized so 10 double-buffered f32 blocks
    stay within block_budget_bytes, and so the grid has >= min_grid steps
    (megacore sharding on v7x)."""
    per_row_bytes = 20 * W_pad * 4          # 10 arrays x 2 buffers x f32
    rows_budget = max(8, (block_budget_bytes // per_row_bytes) // 8 * 8)
    rows_split = max(8, _round_up(pl.cdiv(H, min_grid), 8))
    return max(8, min(rows_budget, rows_split))


# ---------------------------------------------------------------------------
# Loop-invariant preprocessing (do this ONCE, outside the per-step path).
# ---------------------------------------------------------------------------
def prepare_fwi_constants(Mask, Vp_ref, Vs_ref, Den_ref, *,
                          lanes=128, mask_dtype=jnp.bfloat16):
    """Pre-pads the (H, W) reference models / mask to a lane-dense width
    W_pad = round_up(W, 128).  Mask is stored narrow (bf16, exact for 0/1)."""
    H, W = Mask.shape
    W_pad = _round_up(W, lanes)
    pad_cfg = ((0, 0), (0, W_pad - W))

    def padw(x, dt):
        return jnp.pad(x.astype(dt), pad_cfg, mode="edge")

    return {
        "mask": padw(Mask, mask_dtype),
        "vp_ref": padw(Vp_ref, jnp.float32),
        "vs_ref": padw(Vs_ref, jnp.float32),
        "den_ref": padw(Den_ref, jnp.float32),
        "H": H,
        "W": W,
        "W_pad": W_pad,
    }


# ---------------------------------------------------------------------------
# Per-step forward wrapper
# ---------------------------------------------------------------------------
def fwi_forward(Vp, Vs, Den, consts, *, nPml, nPad):
    """Pallas-backed FWI forward up to (Lambda, Mu, masked Den).

    Vp/Vs/Den : (nz, nx) unpadded models (the nn.Parameters).
    consts    : output of prepare_fwi_constants (padded refs / mask, shapes).

    Returns (Lambda, Mu, Den_masked) with shape (H, W_pad); the valid region
    is [:, :consts['W']] — slice lazily only if the consumer needs exact W.
    """
    H, W, W_pad = consts["H"], consts["W"], consts["W_pad"]
    extra_w = W_pad - W

    Vp_p = _replicate_pad(Vp, nPml, nPad, extra_w)
    Vs_p = _replicate_pad(Vs, nPml, nPad, extra_w)
    Den_p = _replicate_pad(Den, nPml, nPad, extra_w)
    assert Vp_p.shape == (H, W_pad), (Vp_p.shape, (H, W_pad))

    tile_h = _choose_tile_h(H, W_pad)
    grid = (pl.cdiv(H, tile_h),)

    spec = pl.BlockSpec((tile_h, W_pad), lambda i: (i, 0))
    out_shape = jax.ShapeDtypeStruct((H, W_pad), jnp.float32)

    n = H * W_pad
    mask_bytes = n * jnp.dtype(consts["mask"].dtype).itemsize
    cost = pl.CostEstimate(
        flops=18 * n,
        transcendentals=0,
        bytes_accessed=9 * n * 4 + mask_bytes,   # 6 f32 in + 3 f32 out + mask
    )

    lam, mu, den = pl.pallas_call(
        _fwi_param_kernel,
        out_shape=(out_shape, out_shape, out_shape),
        grid=grid,
        in_specs=[spec] * 7,
        out_specs=(spec, spec, spec),
        compiler_params=pltpu.CompilerParams(
            dimension_semantics=("parallel",),
            # ~24 MiB of double-buffered blocks + headroom; explicit raise
            # over v5e's 16 MiB default, comfortably inside v7x's 64 MiB.
            vmem_limit_bytes=32 * 1024 * 1024,
        ),
        cost_estimate=cost,
    )(Vp_p, Vs_p, Den_p,
      consts["vp_ref"], consts["vs_ref"], consts["den_ref"], consts["mask"])

    return lam, mu, den


# ---------------------------------------------------------------------------
# Demo / sanity check
# ---------------------------------------------------------------------------
if __name__ == "__main__":
    key = jax.random.PRNGKey(0)
    k1, k2, k3 = jax.random.split(key, 3)

    # Small shapes consistent with the module: nz = nz_orig, nx = nx_orig.
    nz, nx = 16, 16
    nPml, nPad = 4, 8
    H, W = nz + 2 * nPml + nPad, nx + 2 * nPml   # (32, 24)

    # Deterministic "initial" models (what the module buffers as *_ref, padded).
    Vp0 = 3000.0 + 50.0 * jax.random.normal(k1, (nz, nx), dtype=jnp.float32)
    Vs0 = 1800.0 + 30.0 * jax.random.normal(k2, (nz, nx), dtype=jnp.float32)
    Den0 = 2200.0 + 20.0 * jax.random.normal(k3, (nz, nx), dtype=jnp.float32)

    Vp_ref = _replicate_pad(Vp0, nPml, nPad)
    Vs_ref = _replicate_pad(Vs0, nPml, nPad)
    Den_ref = _replicate_pad(Den0, nPml, nPad)

    # "Current" parameters = initial + deterministic perturbation (as after an
    # optimizer step on the nn.Parameters).
    Vp = Vp0 + 25.0
    Vs = Vs0 + 10.0
    Den = Den0 + 5.0

    # Mask: ones in the physical interior, zeros in the PML/pad halo
    # (module default is all-ones; this exercises the blend path).
    Mask = jnp.zeros((H, W), dtype=jnp.float32)
    Mask = Mask.at[nPml:nPml + nz, nPml:nPml + nx].set(1.0)

    # Source time function (analogous to Stf in the module); unused here.
    # TODO(synk): Stf is only consumed by the CUDA wave propagator, not translated.
    Stf = jnp.sin(jnp.linspace(0.0, 6.28, 64, dtype=jnp.float32))[None, :]

    # Loop-invariant preprocessing done once (hoisted out of the step path).
    consts = prepare_fwi_constants(Mask, Vp_ref, Vs_ref, Den_ref)

    lam_p, mu_p, den_p = fwi_forward(Vp, Vs, Den, consts, nPml=nPml, nPad=nPad)
    jax.block_until_ready((lam_p, mu_p, den_p))

    # Lazily slice the lane padding only for comparison with the reference.
    Lambda = lam_p[:, :W]
    Mu = mu_p[:, :W]
    Den_mask = den_p[:, :W]

    # Lightweight sanity check against plain-JAX reference.
    Vp_pad = _replicate_pad(Vp, nPml, nPad)
    Vs_pad = _replicate_pad(Vs, nPml, nPad)
    Den_pad = _replicate_pad(Den, nPml, nPad)
    vp_m = Mask * Vp_pad + (1.0 - Mask) * Vp_ref
    vs_m = Mask * Vs_pad + (1.0 - Mask) * Vs_ref
    dn_m = Mask * Den_pad + (1.0 - Mask) * Den_ref
    lam_ref = (vp_m ** 2 - 2.0 * vs_m ** 2) * dn_m / 1000000.0
    mu_ref = vs_m ** 2 * dn_m / 1000000.0
    assert jnp.allclose(Lambda, lam_ref, rtol=1e-5, atol=1e-5)
    assert jnp.allclose(Mu, mu_ref, rtol=1e-5, atol=1e-5)
    assert jnp.allclose(Den_mask, dn_m, rtol=1e-5, atol=1e-5)

    print("KERNEL_OK")
</pallas_src>

<mosaic_0001>
module attributes {stable_mosaic.version = 11 : i64} {
  func.func @_fwi_param_kernel(%arg0: i32, %arg1: memref<16x128xf32, #tpu.memory_space<vmem>>, %arg2: memref<16x128xf32, #tpu.memory_space<vmem>>, %arg3: memref<16x128xf32, #tpu.memory_space<vmem>>, %arg4: memref<16x128xf32, #tpu.memory_space<vmem>>, %arg5: memref<16x128xf32, #tpu.memory_space<vmem>>, %arg6: memref<16x128xf32, #tpu.memory_space<vmem>>, %arg7: memref<16x128xbf16, #tpu.memory_space<vmem>>, %arg8: memref<16x128xf32, #tpu.memory_space<vmem>>, %arg9: memref<16x128xf32, #tpu.memory_space<vmem>>, %arg10: memref<16x128xf32, #tpu.memory_space<vmem>>) attributes {dimension_semantics = [#tpu.dimension_semantics<parallel>], iteration_bounds = array<i64: 2>, scalar_prefetch = 0 : i64, scratch_operands = 0 : i64, tpu.core_type = #tpu.core_type<tc>, window_params = [{transform_indices = @transform_0, window_bounds = array<i64: 16, 128>}, {transform_indices = @transform_1, window_bounds = array<i64: 16, 128>}, {transform_indices = @transform_2, window_bounds = array<i64: 16, 128>}, {transform_indices = @transform_3, window_bounds = array<i64: 16, 128>}, {transform_indices = @transform_4, window_bounds = array<i64: 16, 128>}, {transform_indices = @transform_5, window_bounds = array<i64: 16, 128>}, {transform_indices = @transform_6, window_bounds = array<i64: 16, 128>}, {transform_indices = @transform_7, window_bounds = array<i64: 16, 128>}, {transform_indices = @transform_8, window_bounds = array<i64: 16, 128>}, {transform_indices = @transform_9, window_bounds = array<i64: 16, 128>}]} {
    %c0 = arith.constant 0 : index
    %c0_0 = arith.constant 0 : index
    %0 = vector.load %arg7[%c0, %c0_0] : memref<16x128xbf16, #tpu.memory_space<vmem>>, vector<16x128xbf16>
    %1 = arith.extf %0 : vector<16x128xbf16> to vector<16x128xf32>
    %c0_1 = arith.constant 0 : index
    %c0_2 = arith.constant 0 : index
    %2 = vector.load %arg4[%c0_1, %c0_2] : memref<16x128xf32, #tpu.memory_space<vmem>>, vector<16x128xf32>
    %c0_3 = arith.constant 0 : index
    %c0_4 = arith.constant 0 : index
    %3 = vector.load %arg5[%c0_3, %c0_4] : memref<16x128xf32, #tpu.memory_space<vmem>>, vector<16x128xf32>
    %c0_5 = arith.constant 0 : index
    %c0_6 = arith.constant 0 : index
    %4 = vector.load %arg6[%c0_5, %c0_6] : memref<16x128xf32, #tpu.memory_space<vmem>>, vector<16x128xf32>
    %c0_7 = arith.constant 0 : index
    %c0_8 = arith.constant 0 : index
    %5 = vector.load %arg1[%c0_7, %c0_8] : memref<16x128xf32, #tpu.memory_space<vmem>>, vector<16x128xf32>
    %6 = arith.subf %5, %2 : vector<16x128xf32>
    %7 = arith.mulf %1, %6 : vector<16x128xf32>
    %8 = arith.addf %2, %7 : vector<16x128xf32>
    %c0_9 = arith.constant 0 : index
    %c0_10 = arith.constant 0 : index
    %9 = vector.load %arg2[%c0_9, %c0_10] : memref<16x128xf32, #tpu.memory_space<vmem>>, vector<16x128xf32>
    %10 = arith.subf %9, %3 : vector<16x128xf32>
    %11 = arith.mulf %1, %10 : vector<16x128xf32>
    %12 = arith.addf %3, %11 : vector<16x128xf32>
    %c0_11 = arith.constant 0 : index
    %c0_12 = arith.constant 0 : index
    %13 = vector.load %arg3[%c0_11, %c0_12] : memref<16x128xf32, #tpu.memory_space<vmem>>, vector<16x128xf32>
    %14 = arith.subf %13, %4 : vector<16x128xf32>
    %15 = arith.mulf %1, %14 : vector<16x128xf32>
    %16 = arith.addf %4, %15 : vector<16x128xf32>
    %17 = arith.mulf %8, %8 : vector<16x128xf32>
    %18 = arith.mulf %12, %12 : vector<16x128xf32>
    %cst = arith.constant 2.000000e+00 : f32
    %19 = vector.broadcast %cst : f32 to vector<16x128xf32>
    %20 = arith.mulf %19, %18 : vector<16x128xf32>
    %21 = arith.subf %17, %20 : vector<16x128xf32>
    %22 = arith.mulf %21, %16 : vector<16x128xf32>
    %cst_13 = arith.constant 9.99999997E-7 : f32
    %23 = vector.broadcast %cst_13 : f32 to vector<16x128xf32>
    %24 = arith.mulf %22, %23 : vector<16x128xf32>
    %c0_14 = arith.constant 0 : index
    %c0_15 = arith.constant 0 : index
    %25 = vector.load %arg8[%c0_14, %c0_15] : memref<16x128xf32, #tpu.memory_space<vmem>>, vector<16x128xf32>
    tpu.vector_store %arg8[%c0_14, %c0_15], %24 {strides = array<i32>} : memref<16x128xf32, #tpu.memory_space<vmem>>, vector<16x128xf32>,
    %26 = arith.mulf %18, %16 : vector<16x128xf32>
    %cst_16 = arith.constant 9.99999997E-7 : f32
    %27 = vector.broadcast %cst_16 : f32 to vector<16x128xf32>
    %28 = arith.mulf %26, %27 : vector<16x128xf32>
    %c0_17 = arith.constant 0 : index
    %c0_18 = arith.constant 0 : index
    %29 = vector.load %arg9[%c0_17, %c0_18] : memref<16x128xf32, #tpu.memory_space<vmem>>, vector<16x128xf32>
    tpu.vector_store %arg9[%c0_17, %c0_18], %28 {strides = array<i32>} : memref<16x128xf32, #tpu.memory_space<vmem>>, vector<16x128xf32>,
    %c0_19 = arith.constant 0 : index
    %c0_20 = arith.constant 0 : index
    %30 = vector.load %arg10[%c0_19, %c0_20] : memref<16x128xf32, #tpu.memory_space<vmem>>, vector<16x128xf32>
    tpu.vector_store %arg10[%c0_19, %c0_20], %16 {strides = array<i32>} : memref<16x128xf32, #tpu.memory_space<vmem>>, vector<16x128xf32>,
    return
  }
  func.func @transform_0(%arg0: i32) -> (i32, i32) {
    %c0_i32 = arith.constant 0 : i32
    %c0_i32_0 = arith.constant 0 : i32
    return %arg0, %c0_i32 : i32, i32
  }
  func.func @transform_1(%arg0: i32) -> (i32, i32) {
    %c0_i32 = arith.constant 0 : i32
    %c0_i32_0 = arith.constant 0 : i32
    return %arg0, %c0_i32 : i32, i32
  }
  func.func @transform_2(%arg0: i32) -> (i32, i32) {
    %c0_i32 = arith.constant 0 : i32
    %c0_i32_0 = arith.constant 0 : i32
    return %arg0, %c0_i32 : i32, i32
  }
  func.func @transform_3(%arg0: i32) -> (i32, i32) {
    %c0_i32 = arith.constant 0 : i32
    %c0_i32_0 = arith.constant 0 : i32
    return %arg0, %c0_i32 : i32, i32
  }
  func.func @transform_4(%arg0: i32) -> (i32, i32) {
    %c0_i32 = arith.constant 0 : i32
    %c0_i32_0 = arith.constant 0 : i32
    return %arg0, %c0_i32 : i32, i32
  }
  func.func @transform_5(%arg0: i32) -> (i32, i32) {
    %c0_i32 = arith.constant 0 : i32
    %c0_i32_0 = arith.constant 0 : i32
    return %arg0, %c0_i32 : i32, i32
  }
  func.func @transform_6(%arg0: i32) -> (i32, i32) {
    %c0_i32 = arith.constant 0 : i32
    %c0_i32_0 = arith.constant 0 : i32
    return %arg0, %c0_i32 : i32, i32
  }
  func.func @transform_7(%arg0: i32) -> (i32, i32) {
    %c0_i32 = arith.constant 0 : i32
    %c0_i32_0 = arith.constant 0 : i32
    return %arg0, %c0_i32 : i32, i32
  }
  func.func @transform_8(%arg0: i32) -> (i32, i32) {
    %c0_i32 = arith.constant 0 : i32
    %c0_i32_0 = arith.constant 0 : i32
    return %arg0, %c0_i32 : i32, i32
  }
  func.func @transform_9(%arg0: i32) -> (i32, i32) {
    %c0_i32 = arith.constant 0 : i32
    %c0_i32_0 = arith.constant 0 : i32
    return %arg0, %c0_i32 : i32, i32
  }
}

</mosaic_0001>

<llo_original>
// kernel: tpu_custom_call.1
$region0: #{tpu_custom_call.1}
  #allocation0 [shape = 'u32[]', space=smem, size = 0x4, offset = 0x4, fixed_abs, tag = 'smem constant byte address 0x4 - core index']
  #allocation1 [shape = 'u32[72,128]{1,0:T(1,128)}', space=vmem, size = 0x9000, scoped, tag = 'internal scratch']
  %s0 = inlined_call_operand.hbm [shape: f32[32,128], index: 0, kind: input, shape index: {}]
  %s1 = inlined_call_operand.hbm [shape: f32[32,128], index: 1, kind: input, shape index: {}]
  %s2 = inlined_call_operand.hbm [shape: f32[32,128], index: 2, kind: input, shape index: {}]
  %s3 = inlined_call_operand.hbm [shape: f32[32,128], index: 3, kind: input, shape index: {}]
  %s4 = inlined_call_operand.hbm [shape: f32[32,128], index: 4, kind: input, shape index: {}]
  %s5 = inlined_call_operand.hbm [shape: f32[32,128], index: 5, kind: input, shape index: {}]
  %s6 = inlined_call_operand.hbm [shape: bf16[32,128], index: 6, kind: input, shape index: {}]
  %s7 = inlined_call_operand.hbm [shape: f32[32,128], index: 7, kind: output, shape index: {0}]
  %s8 = inlined_call_operand.hbm [shape: f32[32,128], index: 8, kind: output, shape index: {1}]
  %s9 = inlined_call_operand.hbm [shape: f32[32,128], index: 9, kind: output, shape index: {2}]
  %10 = xla_tuple %s7, %s8, %s9
  %s11 = sld [smem:[#allocation0]]
  $region105: #{tpu_custom_call.1} parent=0
    _
  %s13 = ssub.s32 1, %s11
  %s14 = scalar_select 0, %s13, %s11
  $region1: #{tpu_custom_call.1} parent=0
    #allocation2 [shape = 'u8[16384]{0}', space=vmem, size = 0x4000, scoped, tag = 'input window, operand 0']
    #allocation3 [shape = 's32[2]{0}', space=sflag, size = 0x8, scoped, tag = 'scoped memory for tpu_custom_call.1']
    #allocation4 [shape = 's32[2]{0}', space=sflag, size = 0x8, scoped, tag = 'scoped memory for tpu_custom_call.1']
    #allocation5 [shape = 'u8[16384]{0}', space=vmem, size = 0x4000, scoped, tag = 'input window, operand 1']
    #allocation6 [shape = 's32[2]{0}', space=sflag, size = 0x8, scoped, tag = 'scoped memory for tpu_custom_call.1']
    #allocation7 [shape = 'u8[16384]{0}', space=vmem, size = 0x4000, scoped, tag = 'input window, operand 2']
    #allocation8 [shape = 'u8[16384]{0}', space=vmem, size = 0x4000, scoped, tag = 'input window, operand 3']
    #allocation9 [shape = 's32[2]{0}', space=sflag, size = 0x8, scoped, tag = 'scoped memory for tpu_custom_call.1']
    #allocation10 [shape = 'u8[16384]{0}', space=vmem, size = 0x4000, scoped, tag = 'input window, operand 4']
    #allocation11 [shape = 'u8[16384]{0}', space=vmem, size = 0x4000, scoped, tag = 'input window, operand 5']
    #allocation12 [shape = 's32[2]{0}', space=sflag, size = 0x8, scoped, tag = 'scoped memory for tpu_custom_call.1']
    #allocation13 [shape = 'u8[8192]{0}', space=vmem, size = 0x2000, scoped, tag = 'input window, operand 6']
    #allocation14 [shape = 'u8[16384]{0}', space=vmem, size = 0x4000, scoped, tag = 'output window, operand 0']
    #allocation15 [shape = 'u8[16384]{0}', space=vmem, size = 0x4000, scoped, tag = 'output window, operand 1']
    #allocation16 [shape = 's32[2]{0}', space=sflag, size = 0x8, scoped, tag = 'scoped memory for tpu_custom_call.1']
    #allocation17 [shape = 'u8[16384]{0}', space=vmem, size = 0x4000, scoped, tag = 'output window, operand 2']
    %15 = vsyncpa [#allocation3], 0
    %s16 = scalar_lea.sflag [#allocation3], 1
    %17 = vsyncpa %s16, 0
    %18 = vsyncpa [#allocation6], 0
    %s19 = scalar_lea.sflag [#allocation6], 1
    %20 = vsyncpa %s19, 0
    %21 = vsyncpa [#allocation9], 0
    %s22 = scalar_lea.sflag [#allocation9], 1
    %23 = vsyncpa %s22, 0
    %24 = vsyncpa [#allocation12], 0
    %s25 = scalar_lea.sflag [#allocation12], 1
    %26 = vsyncpa %s25, 0
    %27 = vsyncpa [#allocation4], 0
    %s28 = scalar_lea.sflag [#allocation4], 1
    %29 = vsyncpa %s28, 0
    %30 = vsyncpa [#allocation16], 0
    %s31 = scalar_lea.sflag [#allocation16], 1
    %32 = vsyncpa %s31, 0
    loop: start=0, step=1, limit=4
    $region2: #{tpu_custom_call.1} parent=1 // loop_pre_header
      _
    $region3: #{tpu_custom_call.1} parent=1 // loop_header
      %s34 = sphi 0, %s38
      %p35 = scmp.ge.s32.totalorder %s34, 4
      %s44 = sphi 0, %s46
      %s47 = sphi 0, %s44
      %s48 = sphi 0, %s47
      %s64 = sphi 0, %s48
      %s70 = sphi 0, %s72
      %s73 = sphi 0, %s70
      %s74 = sphi 0, %s73
      %s90 = sphi 0, %s74
      %s96 = sphi 0, %s98
      %s99 = sphi 0, %s96
      %s100 = sphi 0, %s99
      %s116 = sphi 0, %s100
      %s122 = sphi 0, %s124
      %s125 = sphi 0, %s122
      %s126 = sphi 0, %s125
      %s142 = sphi 0, %s126
      %s148 = sphi 0, %s150
      %s151 = sphi 0, %s148
      %s152 = sphi 0, %s151
      %s168 = sphi 0, %s152
      %s174 = sphi 0, %s176
      %s177 = sphi 0, %s174
      %s178 = sphi 0, %s177
      %s194 = sphi 0, %s178
      %s200 = sphi 0, %s202
      %s203 = sphi 0, %s200
      %s204 = sphi 0, %s203
      %s220 = sphi 0, %s204
      %s226 = sphi 0, %s228
      %s229 = sphi 0, %s226
      %s230 = sphi 0, %s229
      %s246 = sphi 0, %s230
      %s252 = sphi 0, %s254
      %s255 = sphi 0, %s252
      %s256 = sphi 0, %s255
      %s272 = sphi 0, %s256
      %s278 = sphi 0, %s280
      %s281 = sphi 0, %s278
      %s282 = sphi 0, %s281
      %s298 = sphi 0, %s282
    $region4: #{tpu_custom_call.1} parent=1 // loop_header_branch
      %37 = sbr.rel (%p35) target = $region8
    $region5: #{tpu_custom_call.1} parent=1 // loop_body
      %s39 = ssub.s32 %s34, 1
      %s40 = ssub.s32 %s34, 2
      %s41 = sadd.s32 %s34, 1
      %s42 = ssub.s32 %s34, %s41
      %p43 = scmp.eq.s32.totalorder %s42, 0
      %s45 = sadd.s32 %s44, 1
      %s46 = scalar_select %p43, %s44, %s45
      %p49 = pneg %p43
      %p50 = scmp.eq.s32.totalorder %s34, 1
      %p51 = por %p49, %p50
      %p52 = scmp.ne.s32.totalorder %s44, %s47
      %p53 = scmp.eq.s32.totalorder %s34, 0
      %p54 = por %p52, %p53
      %p55 = scmp.ne.s32.totalorder %s44, %s47
      %p56 = scmp.eq.s32.totalorder %s39, 1
      %p57 = por %p55, %p56
      %p58 = scmp.ne.s32.totalorder %s47, %s48
      %p59 = scmp.eq.s32.totalorder %s39, 0
      %p60 = por %p58, %p59
      %p61 = scmp.ne.s32.totalorder %s47, %s48
      %p62 = scmp.eq.s32.totalorder %s40, 1
      %p63 = por %p61, %p62
      %p65 = scmp.ne.s32.totalorder %s48, %s64
      %p66 = scmp.eq.s32.totalorder %s40, 0
      %p67 = por %p65, %p66
      %s68 = ssub.s32 %s34, %s41
      %p69 = scmp.eq.s32.totalorder %s68, 0
      %s71 = sadd.s32 %s70, 1
      %s72 = scalar_select %p69, %s70, %s71
      %p75 = pneg %p69
      %p76 = scmp.eq.s32.totalorder %s34, 1
      %p77 = por %p75, %p76
      %p78 = scmp.ne.s32.totalorder %s70, %s73
      %p79 = scmp.eq.s32.totalorder %s34, 0
      %p80 = por %p78, %p79
      %p81 = scmp.ne.s32.totalorder %s70, %s73
      %p82 = scmp.eq.s32.totalorder %s39, 1
      %p83 = por %p81, %p82
      %p84 = scmp.ne.s32.totalorder %s73, %s74
      %p85 = scmp.eq.s32.totalorder %s39, 0
      %p86 = por %p84, %p85
      %p87 = scmp.ne.s32.totalorder %s73, %s74
      %p88 = scmp.eq.s32.totalorder %s40, 1
      %p89 = por %p87, %p88
      %p91 = scmp.ne.s32.totalorder %s74, %s90
      %p92 = scmp.eq.s32.totalorder %s40, 0
      %p93 = por %p91, %p92
      %s94 = ssub.s32 %s34, %s41
      %p95 = scmp.eq.s32.totalorder %s94, 0
      %s97 = sadd.s32 %s96, 1
      %s98 = scalar_select %p95, %s96, %s97
      %p101 = pneg %p95
      %p102 = scmp.eq.s32.totalorder %s34, 1
      %p103 = por %p101, %p102
      %p104 = scmp.ne.s32.totalorder %s96, %s99
      %p105 = scmp.eq.s32.totalorder %s34, 0
      %p106 = por %p104, %p105
      %p107 = scmp.ne.s32.totalorder %s96, %s99
      %p108 = scmp.eq.s32.totalorder %s39, 1
      %p109 = por %p107, %p108
      %p110 = scmp.ne.s32.totalorder %s99, %s100
      %p111 = scmp.eq.s32.totalorder %s39, 0
      %p112 = por %p110, %p111
      %p113 = scmp.ne.s32.totalorder %s99, %s100
      %p114 = scmp.eq.s32.totalorder %s40, 1
      %p115 = por %p113, %p114
      %p117 = scmp.ne.s32.totalorder %s100, %s116
      %p118 = scmp.eq.s32.totalorder %s40, 0
      %p119 = por %p117, %p118
      %s120 = ssub.s32 %s34, %s41
      %p121 = scmp.eq.s32.totalorder %s120, 0
      %s123 = sadd.s32 %s122, 1
      %s124 = scalar_select %p121, %s122, %s123
      %p127 = pneg %p121
      %p128 = scmp.eq.s32.totalorder %s34, 1
      %p129 = por %p127, %p128
      %p130 = scmp.ne.s32.totalorder %s122, %s125
      %p131 = scmp.eq.s32.totalorder %s34, 0
      %p132 = por %p130, %p131
      %p133 = scmp.ne.s32.totalorder %s122, %s125
      %p134 = scmp.eq.s32.totalorder %s39, 1
      %p135 = por %p133, %p134
      %p136 = scmp.ne.s32.totalorder %s125, %s126
      %p137 = scmp.eq.s32.totalorder %s39, 0
      %p138 = por %p136, %p137
      %p139 = scmp.ne.s32.totalorder %s125, %s126
      %p140 = scmp.eq.s32.totalorder %s40, 1
      %p141 = por %p139, %p140
      %p143 = scmp.ne.s32.totalorder %s126, %s142
      %p144 = scmp.eq.s32.totalorder %s40, 0
      %p145 = por %p143, %p144
      %s146 = ssub.s32 %s34, %s41
      %p147 = scmp.eq.s32.totalorder %s146, 0
      %s149 = sadd.s32 %s148, 1
      %s150 = scalar_select %p147, %s148, %s149
      %p153 = pneg %p147
      %p154 = scmp.eq.s32.totalorder %s34, 1
      %p155 = por %p153, %p154
      %p156 = scmp.ne.s32.totalorder %s148, %s151
      %p157 = scmp.eq.s32.totalorder %s34, 0
      %p158 = por %p156, %p157
      %p159 = scmp.ne.s32.totalorder %s148, %s151
      %p160 = scmp.eq.s32.totalorder %s39, 1
      %p161 = por %p159, %p160
      %p162 = scmp.ne.s32.totalorder %s151, %s152
      %p163 = scmp.eq.s32.totalorder %s39, 0
      %p164 = por %p162, %p163
      %p165 = scmp.ne.s32.totalorder %s151, %s152
      %p166 = scmp.eq.s32.totalorder %s40, 1
      %p167 = por %p165, %p166
      %p169 = scmp.ne.s32.totalorder %s152, %s168
      %p170 = scmp.eq.s32.totalorder %s40, 0
      %p171 = por %p169, %p170
      %s172 = ssub.s32 %s34, %s41
      %p173 = scmp.eq.s32.totalorder %s172, 0
      %s175 = sadd.s32 %s174, 1
      %s176 = scalar_select %p173, %s174, %s175
      %p179 = pneg %p173
      %p180 = scmp.eq.s32.totalorder %s34, 1
      %p181 = por %p179, %p180
      %p182 = scmp.ne.s32.totalorder %s174, %s177
      %p183 = scmp.eq.s32.totalorder %s34, 0
      %p184 = por %p182, %p183
      %p185 = scmp.ne.s32.totalorder %s174, %s177
      %p186 = scmp.eq.s32.totalorder %s39, 1
      %p187 = por %p185, %p186
      %p188 = scmp.ne.s32.totalorder %s177, %s178
      %p189 = scmp.eq.s32.totalorder %s39, 0
      %p190 = por %p188, %p189
      %p191 = scmp.ne.s32.totalorder %s177, %s178
      %p192 = scmp.eq.s32.totalorder %s40, 1
      %p193 = por %p191, %p192
      %p195 = scmp.ne.s32.totalorder %s178, %s194
      %p196 = scmp.eq.s32.totalorder %s40, 0
      %p197 = por %p195, %p196
      %s198 = ssub.s32 %s34, %s41
      %p199 = scmp.eq.s32.totalorder %s198, 0
      %s201 = sadd.s32 %s200, 1
      %s202 = scalar_select %p199, %s200, %s201
      %p205 = pneg %p199
      %p206 = scmp.eq.s32.totalorder %s34, 1
      %p207 = por %p205, %p206
      %p208 = scmp.ne.s32.totalorder %s200, %s203
      %p209 = scmp.eq.s32.totalorder %s34, 0
      %p210 = por %p208, %p209
      %p211 = scmp.ne.s32.totalorder %s200, %s203
      %p212 = scmp.eq.s32.totalorder %s39, 1
      %p213 = por %p211, %p212
      %p214 = scmp.ne.s32.totalorder %s203, %s204
      %p215 = scmp.eq.s32.totalorder %s39, 0
      %p216 = por %p214, %p215
      %p217 = scmp.ne.s32.totalorder %s203, %s204
      %p218 = scmp.eq.s32.totalorder %s40, 1
      %p219 = por %p217, %p218
      %p221 = scmp.ne.s32.totalorder %s204, %s220
      %p222 = scmp.eq.s32.totalorder %s40, 0
      %p223 = por %p221, %p222
      %s224 = ssub.s32 %s34, %s41
      %p225 = scmp.eq.s32.totalorder %s224, 0
      %s227 = sadd.s32 %s226, 1
      %s228 = scalar_select %p225, %s226, %s227
      %p231 = pneg %p225
      %p232 = scmp.eq.s32.totalorder %s34, 1
      %p233 = por %p231, %p232
      %p234 = scmp.ne.s32.totalorder %s226, %s229
      %p235 = scmp.eq.s32.totalorder %s34, 0
      %p236 = por %p234, %p235
      %p237 = scmp.ne.s32.totalorder %s226, %s229
      %p238 = scmp.eq.s32.totalorder %s39, 1
      %p239 = por %p237, %p238
      %p240 = scmp.ne.s32.totalorder %s229, %s230
      %p241 = scmp.eq.s32.totalorder %s39, 0
      %p242 = por %p240, %p241
      %p243 = scmp.ne.s32.totalorder %s229, %s230
      %p244 = scmp.eq.s32.totalorder %s40, 1
      %p245 = por %p243, %p244
      %p247 = scmp.ne.s32.totalorder %s230, %s246
      %p248 = scmp.eq.s32.totalorder %s40, 0
      %p249 = por %p247, %p248
      %s250 = ssub.s32 %s34, %s41
      %p251 = scmp.eq.s32.totalorder %s250, 0
      %s253 = sadd.s32 %s252, 1
      %s254 = scalar_select %p251, %s252, %s253
      %p257 = pneg %p251
      %p258 = scmp.eq.s32.totalorder %s34, 1
      %p259 = por %p257, %p258
      %p260 = scmp.ne.s32.totalorder %s252, %s255
      %p261 = scmp.eq.s32.totalorder %s34, 0
      %p262 = por %p260, %p261
      %p263 = scmp.ne.s32.totalorder %s252, %s255
      %p264 = scmp.eq.s32.totalorder %s39, 1
      %p265 = por %p263, %p264
      %p266 = scmp.ne.s32.totalorder %s255, %s256
      %p267 = scmp.eq.s32.totalorder %s39, 0
      %p268 = por %p266, %p267
      %p269 = scmp.ne.s32.totalorder %s255, %s256
      %p270 = scmp.eq.s32.totalorder %s40, 1
      %p271 = por %p269, %p270
      %p273 = scmp.ne.s32.totalorder %s256, %s272
      %p274 = scmp.eq.s32.totalorder %s40, 0
      %p275 = por %p273, %p274
      %s276 = ssub.s32 %s34, %s41
      %p277 = scmp.eq.s32.totalorder %s276, 0
      %s279 = sadd.s32 %s278, 1
      %s280 = scalar_select %p277, %s278, %s279
      %p283 = pneg %p277
      %p284 = scmp.eq.s32.totalorder %s34, 1
      %p285 = por %p283, %p284
      %p286 = scmp.ne.s32.totalorder %s278, %s281
      %p287 = scmp.eq.s32.totalorder %s34, 0
      %p288 = por %p286, %p287
      %p289 = scmp.ne.s32.totalorder %s278, %s281
      %p290 = scmp.eq.s32.totalorder %s39, 1
      %p291 = por %p289, %p290
      %p292 = scmp.ne.s32.totalorder %s281, %s282
      %p293 = scmp.eq.s32.totalorder %s39, 0
      %p294 = por %p292, %p293
      %p295 = scmp.ne.s32.totalorder %s281, %s282
      %p296 = scmp.eq.s32.totalorder %s40, 1
      %p297 = por %p295, %p296
      %p299 = scmp.ne.s32.totalorder %s282, %s298
      %p300 = scmp.eq.s32.totalorder %s40, 0
      %p301 = por %p299, %p300
      %p302 = scmp.le.s32.totalorder 1, %s34
      %p303 = scmp.lt.s32.totalorder %s34, 3
      %p304 = pnand %p302, %p303
      %p305 = pneg %p304
      // Predicated region
      $region9: #{tpu_custom_call.1} parent=5 // pred_check
        _
      $region10: #{tpu_custom_call.1} parent=5 // pred_check_branch
        %307 = sbr.rel (%p304) target = $region12
      $region11: #{tpu_custom_call.1} parent=5 // pred_region
        %s308 = ssub.s32 %s34, 1
      $region12: #{tpu_custom_call.1} parent=5 // pred_fallthru
        _
      %p309 = scmp.lt.s32.totalorder %s34, 2
      // Predicated region
      $region13: #{tpu_custom_call.1} parent=5 // pred_check
        %p310 = pneg %p309
      $region14: #{tpu_custom_call.1} parent=5 // pred_check_branch
        %312 = sbr.rel (%p310) target = $region16
      $region15: #{tpu_custom_call.1} parent=5 // pred_region
        // Predicated region
        $region17: #{tpu_custom_call.1} parent=15 // pred_check
          %p313 = pneg %p54
        $region18: #{tpu_custom_call.1} parent=15 // pred_check_branch
          %315 = sbr.rel (%p313) target = $region20
        $region19: #{tpu_custom_call.1} parent=15 // pred_region
          %s316 = sand.u32 %s44, 1
          %s317 = scalar_lea.sflag [#allocation3], %s316
          %s318 = sand.u32 %s44, 1
          %s319 = smul.addr %s318, 16
          %s320 = scalar_lea.vmem [#allocation2], %s319
          %s321 = smul.u32 2, %s34
          %323 = vsyncadd %s317, 0
          %s324 = smul.addr %s321, 8
          %s325 = scalar_lea.hbm %s0, %s324
          %s326 = sshll.u32 %s325, 4
          %s327 = int_to_ptr.hbm [resolvable:$true] %s326
          %s328 = sshll.u32 %s320, 4
          %s329 = int_to_ptr.vmem [resolvable:$true] %s328
          %334 = dma.hbm_to_vmem [thread:$0]  %s327, 256, %s329, %s317, 128, 128, 8
        $region20: #{tpu_custom_call.1} parent=15 // pred_fallthru
          _
        // Predicated region
        $region21: #{tpu_custom_call.1} parent=15 // pred_check
          %p335 = pneg %p80
        $region22: #{tpu_custom_call.1} parent=15 // pred_check_branch
          %337 = sbr.rel (%p335) target = $region24
        $region23: #{tpu_custom_call.1} parent=15 // pred_region
          %s338 = sand.u32 %s34, 1
          %s339 = scalar_lea.sflag [#allocation6], %s338
          %s340 = sand.u32 %s70, 1
          %s341 = smul.addr %s340, 16
          %s342 = scalar_lea.vmem [#allocation5], %s341
          %s343 = smul.u32 2, %s34
          %345 = vsyncadd %s339, 0
          %s346 = smul.addr %s343, 8
          %s347 = scalar_lea.hbm %s1, %s346
          %s348 = sshll.u32 %s347, 4
          %s349 = int_to_ptr.hbm [resolvable:$true] %s348
          %s350 = sshll.u32 %s342, 4
          %s351 = int_to_ptr.vmem [resolvable:$true] %s350
          %356 = dma.hbm_to_vmem [thread:$0]  %s349, 256, %s351, %s339, 128, 128, 8
        $region24: #{tpu_custom_call.1} parent=15 // pred_fallthru
          _
        // Predicated region
        $region25: #{tpu_custom_call.1} parent=15 // pred_check
          %p357 = pneg %p106
        $region26: #{tpu_custom_call.1} parent=15 // pred_check_branch
          %359 = sbr.rel (%p357) target = $region28
        $region27: #{tpu_custom_call.1} parent=15 // pred_region
          %s360 = sand.u32 %s34, 1
          %s361 = scalar_lea.sflag [#allocation6], %s360
          %s362 = sand.u32 %s96, 1
          %s363 = smul.addr %s362, 16
          %s364 = scalar_lea.vmem [#allocation7], %s363
          %s365 = smul.u32 2, %s34
          %367 = vsyncadd %s361, 0
          %s368 = smul.addr %s365, 8
          %s369 = scalar_lea.hbm %s2, %s368
          %s370 = sshll.u32 %s369, 4
          %s371 = int_to_ptr.hbm [resolvable:$true] %s370
          %s372 = sshll.u32 %s364, 4
          %s373 = int_to_ptr.vmem [resolvable:$true] %s372
          %378 = dma.hbm_to_vmem [thread:$0]  %s371, 256, %s373, %s361, 128, 128, 8
        $region28: #{tpu_custom_call.1} parent=15 // pred_fallthru
          _
        // Predicated region
        $region29: #{tpu_custom_call.1} parent=15 // pred_check
          %p379 = pneg %p132
        $region30: #{tpu_custom_call.1} parent=15 // pred_check_branch
          %381 = sbr.rel (%p379) target = $region32
        $region31: #{tpu_custom_call.1} parent=15 // pred_region
          %s382 = sand.u32 %s34, 1
          %s383 = scalar_lea.sflag [#allocation9], %s382
          %s384 = sand.u32 %s122, 1
          %s385 = smul.addr %s384, 16
          %s386 = scalar_lea.vmem [#allocation8], %s385
          %s387 = smul.u32 2, %s34
          %389 = vsyncadd %s383, 0
          %s390 = smul.addr %s387, 8
          %s391 = scalar_lea.hbm %s3, %s390
          %s392 = sshll.u32 %s391, 4
          %s393 = int_to_ptr.hbm [resolvable:$true] %s392
          %s394 = sshll.u32 %s386, 4
          %s395 = int_to_ptr.vmem [resolvable:$true] %s394
          %400 = dma.hbm_to_vmem [thread:$0]  %s393, 256, %s395, %s383, 128, 128, 8
        $region32: #{tpu_custom_call.1} parent=15 // pred_fallthru
          _
        // Predicated region
        $region33: #{tpu_custom_call.1} parent=15 // pred_check
          %p401 = pneg %p158
        $region34: #{tpu_custom_call.1} parent=15 // pred_check_branch
          %403 = sbr.rel (%p401) target = $region36
        $region35: #{tpu_custom_call.1} parent=15 // pred_region
          %s404 = sand.u32 %s34, 1
          %s405 = scalar_lea.sflag [#allocation9], %s404
          %s406 = sand.u32 %s148, 1
          %s407 = smul.addr %s406, 16
          %s408 = scalar_lea.vmem [#allocation10], %s407
          %s409 = smul.u32 2, %s34
          %411 = vsyncadd %s405, 0
          %s412 = smul.addr %s409, 8
          %s413 = scalar_lea.hbm %s4, %s412
          %s414 = sshll.u32 %s413, 4
          %s415 = int_to_ptr.hbm [resolvable:$true] %s414
          %s416 = sshll.u32 %s408, 4
          %s417 = int_to_ptr.vmem [resolvable:$true] %s416
          %422 = dma.hbm_to_vmem [thread:$0]  %s415, 256, %s417, %s405, 128, 128, 8
        $region36: #{tpu_custom_call.1} parent=15 // pred_fallthru
          _
        // Predicated region
        $region37: #{tpu_custom_call.1} parent=15 // pred_check
          %p423 = pneg %p184
        $region38: #{tpu_custom_call.1} parent=15 // pred_check_branch
          %425 = sbr.rel (%p423) target = $region40
        $region39: #{tpu_custom_call.1} parent=15 // pred_region
          %s426 = sand.u32 %s34, 1
          %s427 = scalar_lea.sflag [#allocation12], %s426
          %s428 = sand.u32 %s174, 1
          %s429 = smul.addr %s428, 16
          %s430 = scalar_lea.vmem [#allocation11], %s429
          %s431 = smul.u32 2, %s34
          %433 = vsyncadd %s427, 0
          %s434 = smul.addr %s431, 8
          %s435 = scalar_lea.hbm %s5, %s434
          %s436 = sshll.u32 %s435, 4
          %s437 = int_to_ptr.hbm [resolvable:$true] %s436
          %s438 = sshll.u32 %s430, 4
          %s439 = int_to_ptr.vmem [resolvable:$true] %s438
          %444 = dma.hbm_to_vmem [thread:$0]  %s437, 256, %s439, %s427, 128, 128, 8
        $region40: #{tpu_custom_call.1} parent=15 // pred_fallthru
          _
        // Predicated region
        $region41: #{tpu_custom_call.1} parent=15 // pred_check
          %p445 = pneg %p210
        $region42: #{tpu_custom_call.1} parent=15 // pred_check_branch
          %447 = sbr.rel (%p445) target = $region44
        $region43: #{tpu_custom_call.1} parent=15 // pred_region
          %s448 = sand.u32 %s34, 1
          %s449 = scalar_lea.sflag [#allocation12], %s448
          %s450 = sand.u32 %s200, 1
          %s451 = smul.addr %s450, 8
          %s452 = scalar_lea.vmem [#allocation13], %s451
          %s453 = smul.u32 2, %s34
          %455 = vsyncadd %s449, 0
          %s456 = smul.addr %s453, 4
          %s457 = scalar_lea.hbm %s6, %s456
          %s458 = sshll.u32 %s457, 4
          %s459 = int_to_ptr.hbm [resolvable:$true] %s458
          %s460 = sshll.u32 %s452, 4
          %s461 = int_to_ptr.vmem [resolvable:$true] %s460
          %466 = dma.hbm_to_vmem [thread:$0]  %s459, 128, %s461, %s449, 64, 64, 4
        $region44: #{tpu_custom_call.1} parent=15 // pred_fallthru
          _
      $region16: #{tpu_custom_call.1} parent=5 // pred_fallthru
        _
      %p467 = scmp.le.s32.totalorder 1, %s34
      %p468 = scmp.lt.s32.totalorder %s34, 3
      %p469 = pnand %p467, %p468
      %p470 = pneg %p469
      // Predicated region
      $region45: #{tpu_custom_call.1} parent=5 // pred_check
        _
      $region46: #{tpu_custom_call.1} parent=5 // pred_check_branch
        %472 = sbr.rel (%p469) target = $region48
      $region47: #{tpu_custom_call.1} parent=5 // pred_region
        %s473 = ssub.s32 %s34, 1
        %s474 = sand.u32 %s47, 1
        %s475 = scalar_lea.sflag [#allocation3], %s474
        %s476 = sand.u32 %s47, 1
        %s477 = smul.addr %s476, 16
        %s478 = scalar_lea.vmem [#allocation2], %s477
        // Predicated region
        $region49: #{tpu_custom_call.1} parent=47 // pred_check
          %p479 = pneg %p60
        $region50: #{tpu_custom_call.1} parent=47 // pred_check_branch
          %481 = sbr.rel (%p479) target = $region52
        $region51: #{tpu_custom_call.1} parent=47 // pred_region
          %483 = dma.done %s475, 256
        $region52: #{tpu_custom_call.1} parent=47 // pred_fallthru
          _
        %s484 = sand.u32 %s39, 1
        %s485 = scalar_lea.sflag [#allocation6], %s484
        %s486 = sand.u32 %s73, 1
        %s487 = smul.addr %s486, 16
        %s488 = scalar_lea.vmem [#allocation5], %s487
        // Predicated region
        $region53: #{tpu_custom_call.1} parent=47 // pred_check
          %p489 = pneg %p86
        $region54: #{tpu_custom_call.1} parent=47 // pred_check_branch
          %491 = sbr.rel (%p489) target = $region56
        $region55: #{tpu_custom_call.1} parent=47 // pred_region
          %493 = dma.done %s485, 256
        $region56: #{tpu_custom_call.1} parent=47 // pred_fallthru
          _
        %s494 = sand.u32 %s39, 1
        %s495 = scalar_lea.sflag [#allocation6], %s494
        %s496 = sand.u32 %s99, 1
        %s497 = smul.addr %s496, 16
        %s498 = scalar_lea.vmem [#allocation7], %s497
        // Predicated region
        $region57: #{tpu_custom_call.1} parent=47 // pred_check
          %p499 = pneg %p112
        $region58: #{tpu_custom_call.1} parent=47 // pred_check_branch
          %501 = sbr.rel (%p499) target = $region60
        $region59: #{tpu_custom_call.1} parent=47 // pred_region
          %503 = dma.done %s495, 256
        $region60: #{tpu_custom_call.1} parent=47 // pred_fallthru
          _
        %s504 = sand.u32 %s39, 1
        %s505 = scalar_lea.sflag [#allocation9], %s504
        %s506 = sand.u32 %s125, 1
        %s507 = smul.addr %s506, 16
        %s508 = scalar_lea.vmem [#allocation8], %s507
        // Predicated region
        $region61: #{tpu_custom_call.1} parent=47 // pred_check
          %p509 = pneg %p138
        $region62: #{tpu_custom_call.1} parent=47 // pred_check_branch
          %511 = sbr.rel (%p509) target = $region64
        $region63: #{tpu_custom_call.1} parent=47 // pred_region
          %513 = dma.done %s505, 256
        $region64: #{tpu_custom_call.1} parent=47 // pred_fallthru
          _
        %s514 = sand.u32 %s39, 1
        %s515 = scalar_lea.sflag [#allocation9], %s514
        %s516 = sand.u32 %s151, 1
        %s517 = smul.addr %s516, 16
        %s518 = scalar_lea.vmem [#allocation10], %s517
        // Predicated region
        $region65: #{tpu_custom_call.1} parent=47 // pred_check
          %p519 = pneg %p164
        $region66: #{tpu_custom_call.1} parent=47 // pred_check_branch
          %521 = sbr.rel (%p519) target = $region68
        $region67: #{tpu_custom_call.1} parent=47 // pred_region
          %523 = dma.done %s515, 256
        $region68: #{tpu_custom_call.1} parent=47 // pred_fallthru
          _
        %s524 = sand.u32 %s39, 1
        %s525 = scalar_lea.sflag [#allocation12], %s524
        %s526 = sand.u32 %s177, 1
        %s527 = smul.addr %s526, 16
        %s528 = scalar_lea.vmem [#allocation11], %s527
        // Predicated region
        $region69: #{tpu_custom_call.1} parent=47 // pred_check
          %p529 = pneg %p190
        $region70: #{tpu_custom_call.1} parent=47 // pred_check_branch
          %531 = sbr.rel (%p529) target = $region72
        $region71: #{tpu_custom_call.1} parent=47 // pred_region
          %533 = dma.done %s525, 256
        $region72: #{tpu_custom_call.1} parent=47 // pred_fallthru
          _
        %s534 = sand.u32 %s39, 1
        %s535 = scalar_lea.sflag [#allocation12], %s534
        %s536 = sand.u32 %s203, 1
        %s537 = smul.addr %s536, 8
        %s538 = scalar_lea.vmem [#allocation13], %s537
        // Predicated region
        $region73: #{tpu_custom_call.1} parent=47 // pred_check
          %p539 = pneg %p216
        $region74: #{tpu_custom_call.1} parent=47 // pred_check_branch
          %541 = sbr.rel (%p539) target = $region76
        $region75: #{tpu_custom_call.1} parent=47 // pred_region
          %543 = dma.done %s535, 128
        $region76: #{tpu_custom_call.1} parent=47 // pred_fallthru
          _
        %s544 = sand.u32 %s47, 1
        %s545 = scalar_lea.sflag [#allocation3], %s544
        %s546 = sand.u32 %s47, 1
        %s547 = smul.addr %s546, 16
        %s548 = scalar_lea.vmem [#allocation2], %s547
        %p549 = pneg %p60
        %p550 = pneg %p57
        %s551 = sand.u32 %s39, 1
        %s552 = scalar_lea.sflag [#allocation6], %s551
        %s553 = sand.u32 %s73, 1
        %s554 = smul.addr %s553, 16
        %s555 = scalar_lea.vmem [#allocation5], %s554
        %p556 = pneg %p86
        %p557 = pneg %p83
        %s558 = sand.u32 %s39, 1
        %s559 = scalar_lea.sflag [#allocation6], %s558
        %s560 = sand.u32 %s99, 1
        %s561 = smul.addr %s560, 16
        %s562 = scalar_lea.vmem [#allocation7], %s561
        %p563 = pneg %p112
        %p564 = pneg %p109
        %s565 = sand.u32 %s39, 1
        %s566 = scalar_lea.sflag [#allocation9], %s565
        %s567 = sand.u32 %s125, 1
        %s568 = smul.addr %s567, 16
        %s569 = scalar_lea.vmem [#allocation8], %s568
        %p570 = pneg %p138
        %p571 = pneg %p135
        %s572 = sand.u32 %s39, 1
        %s573 = scalar_lea.sflag [#allocation9], %s572
        %s574 = sand.u32 %s151, 1
        %s575 = smul.addr %s574, 16
        %s576 = scalar_lea.vmem [#allocation10], %s575
        %p577 = pneg %p164
        %p578 = pneg %p161
        %s579 = sand.u32 %s39, 1
        %s580 = scalar_lea.sflag [#allocation12], %s579
        %s581 = sand.u32 %s177, 1
        %s582 = smul.addr %s581, 16
        %s583 = scalar_lea.vmem [#allocation11], %s582
        %p584 = pneg %p190
        %p585 = pneg %p187
        %s586 = sand.u32 %s39, 1
        %s587 = scalar_lea.sflag [#allocation12], %s586
        %s588 = sand.u32 %s203, 1
        %s589 = smul.addr %s588, 8
        %s590 = scalar_lea.vmem [#allocation13], %s589
        %p591 = pneg %p216
        %p592 = pneg %p213
        %p593 = pneg %p242
        %p594 = pneg %p239
        %s595 = sand.u32 %s229, 1
        %s596 = scalar_lea.sflag [#allocation4], %s595
        %s597 = sand.u32 %s229, 1
        %s598 = smul.addr %s597, 16
        %s599 = scalar_lea.vmem [#allocation14], %s598
        %p600 = pneg %p268
        %p601 = pneg %p265
        %s602 = sand.u32 %s39, 1
        %s603 = scalar_lea.sflag [#allocation16], %s602
        %s604 = sand.u32 %s255, 1
        %s605 = smul.addr %s604, 16
        %s606 = scalar_lea.vmem [#allocation15], %s605
        %p607 = pneg %p294
        %p608 = pneg %p291
        %s609 = sand.u32 %s39, 1
        %s610 = scalar_lea.sflag [#allocation16], %s609
        %s611 = sand.u32 %s281, 1
        %s612 = smul.addr %s611, 16
        %s613 = scalar_lea.vmem [#allocation17], %s612
        %s614 = smul.u32 2, %s39
        %s615 = smul.u32 2, %s39
        %s616 = smul.u32 2, %s39
        %s617 = smul.u32 2, %s39
        %s618 = smul.u32 2, %s39
        %s619 = smul.u32 2, %s39
        %s620 = smul.u32 2, %s39
        %s621 = smul.u32 2, %s39
        %s622 = smul.u32 2, %s39
        %s623 = smul.u32 2, %s39
        %v624 = vld [vmem:[%s538] sm:$0xf]
        %v625 = vld [vmem:[%s538 + $0x4] sm:$0xf]
        %v626 = vunpack.c.l.bf16 %v624
        %v627 = vunpack.c.l.bf16 %v625
        %v628 = vld [vmem:[%s508] sm:$0xff]
        %v629 = vld [vmem:[%s508 + $0x8] sm:$0xff]
        %v630 = vld [vmem:[%s518] sm:$0xff]
        %v631 = vld [vmem:[%s518 + $0x8] sm:$0xff]
        %v632 = vld [vmem:[%s528] sm:$0xff]
        %v633 = vld [vmem:[%s528 + $0x8] sm:$0xff]
        %v634 = vld [vmem:[%s478] sm:$0xff]
        %v635 = vld [vmem:[%s478 + $0x8] sm:$0xff]
        %v636 = vsub.f32 %v634, %v628
        %v637 = vsub.f32 %v635, %v629
        %v638 = vmul.f32 %v626, %v636
        %v639 = vmul.f32 %v627, %v637
        %v640 = vadd.f32 %v628, %v638
        %v641 = vadd.f32 %v629, %v639
        %v642 = vld [vmem:[%s488] sm:$0xff]
        %v643 = vld [vmem:[%s488 + $0x8] sm:$0xff]
        %v644 = vsub.f32 %v642, %v630
        %v645 = vsub.f32 %v643, %v631
        %v646 = vmul.f32 %v626, %v644
        %v647 = vmul.f32 %v627, %v645
        %v648 = vadd.f32 %v630, %v646
        %v649 = vadd.f32 %v631, %v647
        %v650 = vld [vmem:[%s498] sm:$0xff]
        %v651 = vld [vmem:[%s498 + $0x8] sm:$0xff]
        %v652 = vsub.f32 %v650, %v632
        %v653 = vsub.f32 %v651, %v633
        %v654 = vmul.f32 %v626, %v652
        %v655 = vmul.f32 %v627, %v653
        %v656 = vadd.f32 %v632, %v654
        %v657 = vadd.f32 %v633, %v655
        %v658 = vmul.f32 %v640, %v640
        %v659 = vmul.f32 %v641, %v641
        %v660 = vmul.f32 %v648, %v648
        %v661 = vmul.f32 %v649, %v649
        %v662 = vmul.f32 %v660, 2.0
        %v663 = vmul.f32 %v661, 2.0
        %v664 = vsub.f32 %v658, %v662
        %v665 = vsub.f32 %v659, %v663
        %v666 = vmul.f32 %v664, %v656
        %v667 = vmul.f32 %v665, %v657
        %v668 = vmul.f32 %v666, 1e-06
        %v669 = vmul.f32 %v667, 1e-06
        %670 = vst [vmem:[%s599] sm:$0xff] %v668
        %671 = vst [vmem:[%s599 + $0x8] sm:$0xff] %v669
        %v672 = vmul.f32 %v660, %v656
        %v673 = vmul.f32 %v661, %v657
        %v674 = vmul.f32 %v672, 1e-06
        %v675 = vmul.f32 %v673, 1e-06
        %676 = vst [vmem:[%s606] sm:$0xff] %v674
        %677 = vst [vmem:[%s606 + $0x8] sm:$0xff] %v675
        %678 = vst [vmem:[%s613] sm:$0xff] %v656
        %679 = vst [vmem:[%s613 + $0x8] sm:$0xff] %v657
        %s680 = sand.u32 %s229, 1
        %s681 = scalar_lea.sflag [#allocation4], %s680
        %s682 = sand.u32 %s229, 1
        %s683 = smul.addr %s682, 16
        %s684 = scalar_lea.vmem [#allocation14], %s683
        %s685 = sand.u32 %s39, 1
        %s686 = scalar_lea.sflag [#allocation16], %s685
        %s687 = sand.u32 %s255, 1
        %s688 = smul.addr %s687, 16
        %s689 = scalar_lea.vmem [#allocation15], %s688
        %s690 = sand.u32 %s39, 1
        %s691 = scalar_lea.sflag [#allocation16], %s690
        %s692 = sand.u32 %s281, 1
        %s693 = smul.addr %s692, 16
        %s694 = scalar_lea.vmem [#allocation17], %s693
        // Predicated region
        $region77: #{tpu_custom_call.1} parent=47 // pred_check
          %p695 = pneg %p239
        $region78: #{tpu_custom_call.1} parent=47 // pred_check_branch
          %697 = sbr.rel (%p695) target = $region80
        $region79: #{tpu_custom_call.1} parent=47 // pred_region
          %s698 = smul.u32 2, %s39
          %700 = vsyncadd %s681, 0
          %s701 = smul.addr %s698, 8
          %s702 = scalar_lea.hbm %s7, %s701
          %s703 = sshll.u32 %s684, 4
          %s704 = int_to_ptr.vmem [resolvable:$true] %s703
          %s705 = sshll.u32 %s702, 4
          %s706 = int_to_ptr.hbm [resolvable:$true] %s705
          %711 = dma.vmem_to_hbm [thread:$0]  %s704, 256, %s706, %s681, 128, 128, 8
        $region80: #{tpu_custom_call.1} parent=47 // pred_fallthru
          _
        // Predicated region
        $region81: #{tpu_custom_call.1} parent=47 // pred_check
          %p712 = pneg %p265
        $region82: #{tpu_custom_call.1} parent=47 // pred_check_branch
          %714 = sbr.rel (%p712) target = $region84
        $region83: #{tpu_custom_call.1} parent=47 // pred_region
          %s715 = smul.u32 2, %s39
          %717 = vsyncadd %s686, 0
          %s718 = smul.addr %s715, 8
          %s719 = scalar_lea.hbm %s8, %s718
          %s720 = sshll.u32 %s689, 4
          %s721 = int_to_ptr.vmem [resolvable:$true] %s720
          %s722 = sshll.u32 %s719, 4
          %s723 = int_to_ptr.hbm [resolvable:$true] %s722
          %728 = dma.vmem_to_hbm [thread:$0]  %s721, 256, %s723, %s686, 128, 128, 8
        $region84: #{tpu_custom_call.1} parent=47 // pred_fallthru
          _
        // Predicated region
        $region85: #{tpu_custom_call.1} parent=47 // pred_check
          %p729 = pneg %p291
        $region86: #{tpu_custom_call.1} parent=47 // pred_check_branch
          %731 = sbr.rel (%p729) target = $region88
        $region87: #{tpu_custom_call.1} parent=47 // pred_region
          %s732 = smul.u32 2, %s39
          %734 = vsyncadd %s691, 0
          %s735 = smul.addr %s732, 8
          %s736 = scalar_lea.hbm %s9, %s735
          %s737 = sshll.u32 %s694, 4
          %s738 = int_to_ptr.vmem [resolvable:$true] %s737
          %s739 = sshll.u32 %s736, 4
          %s740 = int_to_ptr.hbm [resolvable:$true] %s739
          %745 = dma.vmem_to_hbm [thread:$0]  %s738, 256, %s740, %s691, 128, 128, 8
        $region88: #{tpu_custom_call.1} parent=47 // pred_fallthru
          _
      $region48: #{tpu_custom_call.1} parent=5 // pred_fallthru
        _
      %p746 = scmp.le.s32.totalorder 2, %s34
      // Predicated region
      $region89: #{tpu_custom_call.1} parent=5 // pred_check
        %p747 = pneg %p746
      $region90: #{tpu_custom_call.1} parent=5 // pred_check_branch
        %749 = sbr.rel (%p747) target = $region92
      $region91: #{tpu_custom_call.1} parent=5 // pred_region
        %s750 = ssub.s32 %s34, 2
        // Predicated region
        $region93: #{tpu_custom_call.1} parent=91 // pred_check
          %p751 = pneg %p245
        $region94: #{tpu_custom_call.1} parent=91 // pred_check_branch
          %753 = sbr.rel (%p751) target = $region96
        $region95: #{tpu_custom_call.1} parent=91 // pred_region
          %s754 = sand.u32 %s230, 1
          %s755 = scalar_lea.sflag [#allocation4], %s754
          %s756 = sand.u32 %s230, 1
          %s757 = smul.addr %s756, 16
          %s758 = scalar_lea.vmem [#allocation14], %s757
          %760 = dma.done %s755, 256
        $region96: #{tpu_custom_call.1} parent=91 // pred_fallthru
          _
        // Predicated region
        $region97: #{tpu_custom_call.1} parent=91 // pred_check
          %p761 = pneg %p271
        $region98: #{tpu_custom_call.1} parent=91 // pred_check_branch
          %763 = sbr.rel (%p761) target = $region100
        $region99: #{tpu_custom_call.1} parent=91 // pred_region
          %s764 = sand.u32 %s40, 1
          %s765 = scalar_lea.sflag [#allocation16], %s764
          %s766 = sand.u32 %s256, 1
          %s767 = smul.addr %s766, 16
          %s768 = scalar_lea.vmem [#allocation15], %s767
          %770 = dma.done %s765, 256
        $region100: #{tpu_custom_call.1} parent=91 // pred_fallthru
          _
        // Predicated region
        $region101: #{tpu_custom_call.1} parent=91 // pred_check
          %p771 = pneg %p297
        $region102: #{tpu_custom_call.1} parent=91 // pred_check_branch
          %773 = sbr.rel (%p771) target = $region104
        $region103: #{tpu_custom_call.1} parent=91 // pred_region
          %s774 = sand.u32 %s40, 1
          %s775 = scalar_lea.sflag [#allocation16], %s774
          %s776 = sand.u32 %s282, 1
          %s777 = smul.addr %s776, 16
          %s778 = scalar_lea.vmem [#allocation17], %s777
          %780 = dma.done %s775, 256
        $region104: #{tpu_custom_call.1} parent=91 // pred_fallthru
          _
      $region92: #{tpu_custom_call.1} parent=5 // pred_fallthru
        _
    $region6: #{tpu_custom_call.1} parent=1 // loop_footer
      %s38 = sadd.s32 1, %s34
    $region7: #{tpu_custom_call.1} parent=1 // loop_footer_branch
      %33 = sbr.rel target = $region3
    $region8: #{tpu_custom_call.1} parent=1 // loop_exit
      _
    %781 = vsyncpa [#allocation3], 1
    %s782 = scalar_lea.sflag [#allocation3], 1
    %783 = vsyncpa %s782, 1
    %784 = vsyncpa [#allocation6], 1
    %s785 = scalar_lea.sflag [#allocation6], 1
    %786 = vsyncpa %s785, 1
    %787 = vsyncpa [#allocation9], 1
    %s788 = scalar_lea.sflag [#allocation9], 1
    %789 = vsyncpa %s788, 1
    %790 = vsyncpa [#allocation12], 1
    %s791 = scalar_lea.sflag [#allocation12], 1
    %792 = vsyncpa %s791, 1
    %793 = vsyncpa [#allocation4], 1
    %s794 = scalar_lea.sflag [#allocation4], 1
    %795 = vsyncpa %s794, 1
    %796 = vsyncpa [#allocation16], 1
    %s797 = scalar_lea.sflag [#allocation16], 1
    %798 = vsyncpa %s797, 1

</llo_original>
